<compile_context>
chip_gen: v5e
topology: v5e:2x2
jax: 0.10.0
libtpu: 0.0.40
codegen_flags: <defaults>
</compile_context>

<pallas_src>
import functools

import jax
import jax.numpy as jnp
from jax import lax
from jax.experimental import pallas as pl
from jax.experimental.pallas import tpu as pltpu

MARGIN = 1.0
_EPS = 1e-6  # torch pairwise_distance default eps


def _contrastive_loss_kernel(o1_ref, o2_ref, lbl_ref, out_ref, acc_ref, *,
                             batch, tile_b, inv_batch):
    pid = pl.program_id(0)

    @pl.when(pid == 0)
    def _():
        acc_ref[...] = jnp.zeros_like(acc_ref)

    # Upcast to f32 *inside* the kernel (native dtype on the wire).
    o1 = o1_ref[...].astype(jnp.float32)                    # (tile_b, D)
    o2 = o2_ref[...].astype(jnp.float32)                    # (tile_b, D)
    diff = o1 - o2 + _EPS                                   # torch: eps added to diff
    sq_sum = jnp.sum(diff * diff, axis=-1, keepdims=True)   # (tile_b, 1)

    dist = jnp.sqrt(sq_sum)                                 # only needed for hinge
    lbl = lbl_ref[...].astype(jnp.float32)                  # (tile_b, 1)
    hinge = jnp.maximum(MARGIN - dist, 0.0)
    per_sample = (1.0 - lbl) * sq_sum + lbl * (hinge * hinge)

    # Mask rows past the true batch (last, possibly partial, tile).
    row = pid * tile_b + lax.broadcasted_iota(jnp.int32, per_sample.shape, 0)
    per_sample = jnp.where(row < batch, per_sample, 0.0)

    acc_ref[...] += jnp.sum(per_sample, keepdims=True)      # (1, 1) partial sum

    @pl.when(pid == pl.num_programs(0) - 1)
    def _():
        out_ref[...] = acc_ref[...] * inv_batch


def _choose_tile_b(batch, dim, itemsize):
    """Largest batch tile that keeps double-buffered inputs well under VMEM.

    Budget ~24 MiB: 2 inputs x 2 pipeline buffers x TILE_B x D x itemsize,
    sized for the smallest generation (v7x: 64 MiB physical VMEM).
    """
    budget = 24 * 1024 * 1024
    per_row = 2 * 2 * dim * itemsize
    tile = budget // max(per_row, 1)
    tile = min(tile, 1024, batch)
    if tile >= batch:
        return batch
    return max(8, (tile // 8) * 8)  # second-to-last block dim must be /8


def contrastive_loss(output1, output2, label, *, tile_b=None):
    """output1, output2: (B, D); label: (B,). Returns scalar f32 mean loss."""
    B, D = output1.shape
    itemsize = jnp.dtype(output1.dtype).itemsize
    if tile_b is None:
        tile_b = _choose_tile_b(B, D, itemsize)
    grid = (pl.cdiv(B, tile_b),)

    label_col = label.reshape(B, 1)

    kernel = functools.partial(
        _contrastive_loss_kernel, batch=B, tile_b=tile_b, inv_batch=1.0 / B)

    bytes_accessed = (2 * B * D * itemsize
                      + B * jnp.dtype(label_col.dtype).itemsize + 4)

    out = pl.pallas_call(
        kernel,
        out_shape=jax.ShapeDtypeStruct((1, 1), jnp.float32),
        grid_spec=pltpu.PrefetchScalarGridSpec(
            num_scalar_prefetch=0,
            grid=grid,
            in_specs=[
                pl.BlockSpec((tile_b, D), lambda i: (i, 0)),
                pl.BlockSpec((tile_b, D), lambda i: (i, 0)),
                pl.BlockSpec((tile_b, 1), lambda i: (i, 0)),
            ],
            out_specs=pl.BlockSpec((1, 1), lambda i: (0, 0)),
            scratch_shapes=[pltpu.VMEM((1, 1), jnp.float32)],
        ),
        compiler_params=pltpu.CompilerParams(
            dimension_semantics=("arbitrary",),   # output is a resident accumulator
            vmem_limit_bytes=64 << 20,
        ),
        cost_estimate=pl.CostEstimate(
            flops=3 * B * D + 8 * B,
            transcendentals=B,
            bytes_accessed=bytes_accessed,
        ),
    )(output1, output2, label_col)
    return out[0, 0]


def _reference_loss(o1, o2, label):
    d = jnp.sqrt(jnp.sum((o1.astype(jnp.float32) - o2.astype(jnp.float32)
                          + _EPS) ** 2, axis=-1))
    lbl = label.astype(jnp.float32)
    return jnp.mean((1.0 - lbl) * d ** 2
                    + lbl * jnp.maximum(MARGIN - d, 0.0) ** 2)


if __name__ == "__main__":
    key = jax.random.PRNGKey(0)
    k1, k2, k3, k4, k5, k6 = jax.random.split(key, 6)

    # Small case (single tile).
    B, D = 8, 32
    o1 = jax.random.normal(k1, (B, D), dtype=jnp.float32)
    o2 = jax.random.normal(k2, (B, D), dtype=jnp.float32)
    lbl = jax.random.bernoulli(k3, 0.5, (B,)).astype(jnp.float32)

    loss = contrastive_loss(o1, o2, lbl)
    jax.block_until_ready(loss)
    ref = _reference_loss(o1, o2, lbl)
    assert jnp.allclose(loss, ref, rtol=1e-5, atol=1e-6), (loss, ref)

    # Multi-tile case with B not divisible by the tile (exercises the grid
    # accumulator + padded-row masking).
    B2, D2 = 20, 32
    o1b = jax.random.normal(k4, (B2, D2), dtype=jnp.float32)
    o2b = jax.random.normal(k5, (B2, D2), dtype=jnp.float32)
    lblb = jax.random.bernoulli(k6, 0.5, (B2,)).astype(jnp.float32)

    loss2 = contrastive_loss(o1b, o2b, lblb, tile_b=8)
    jax.block_until_ready(loss2)
    ref2 = _reference_loss(o1b, o2b, lblb)
    assert jnp.allclose(loss2, ref2, rtol=1e-5, atol=1e-6), (loss2, ref2)

    print("KERNEL_OK")
</pallas_src>

<mosaic_0001>
module attributes {stable_mosaic.version = 11 : i64} {
  func.func @_contrastive_loss_kernel(%arg0: i32, %arg1: memref<8x32xf32, #tpu.memory_space<vmem>>, %arg2: memref<8x32xf32, #tpu.memory_space<vmem>>, %arg3: memref<8x1xf32, #tpu.memory_space<vmem>>, %arg4: memref<1x1xf32, #tpu.memory_space<vmem>>, %arg5: memref<1x1xf32, #tpu.memory_space<vmem>>) attributes {dimension_semantics = [#tpu.dimension_semantics<arbitrary>], iteration_bounds = array<i64: 1>, scalar_prefetch = 0 : i64, scratch_operands = 1 : i64, tpu.core_type = #tpu.core_type<tc>, window_params = [{transform_indices = @transform_0, window_bounds = array<i64: 8, 32>}, {transform_indices = @transform_1, window_bounds = array<i64: 8, 32>}, {transform_indices = @transform_2, window_bounds = array<i64: 8, 1>}, {pipeline_mode = #tpu.pipeline_mode<synchronous>, transform_indices = @transform_3, window_bounds = array<i64: 1, 1>}]} {
    %c0_i32 = arith.constant 0 : i32
    %0 = arith.cmpi eq, %arg0, %c0_i32 : i32
    %1 = arith.extui %0 : i1 to i32
    %c0_i32_0 = arith.constant 0 : i32
    %2 = arith.cmpi ne, %1, %c0_i32_0 : i32
    scf.if %2 {
      %cst_19 = arith.constant 0.000000e+00 : f32
      %42 = vector.broadcast %cst_19 : f32 to vector<1x1xf32>
      %c0_20 = arith.constant 0 : index
      %c0_21 = arith.constant 0 : index
      %43 = vector.load %arg5[%c0_20, %c0_21] : memref<1x1xf32, #tpu.memory_space<vmem>>, vector<1x1xf32>
      tpu.vector_store %arg5[%c0_20, %c0_21], %42 {strides = array<i32>} : memref<1x1xf32, #tpu.memory_space<vmem>>, vector<1x1xf32>,
    } else {
    }
    %c0 = arith.constant 0 : index
    %c0_1 = arith.constant 0 : index
    %3 = vector.load %arg1[%c0, %c0_1] : memref<8x32xf32, #tpu.memory_space<vmem>>, vector<8x32xf32>
    %c0_2 = arith.constant 0 : index
    %c0_3 = arith.constant 0 : index
    %4 = vector.load %arg2[%c0_2, %c0_3] : memref<8x32xf32, #tpu.memory_space<vmem>>, vector<8x32xf32>
    %5 = arith.subf %3, %4 : vector<8x32xf32>
    %cst = arith.constant 9.99999997E-7 : f32
    %6 = vector.broadcast %cst : f32 to vector<8x32xf32>
    %7 = arith.addf %5, %6 : vector<8x32xf32>
    %8 = arith.mulf %7, %7 : vector<8x32xf32>
    %cst_4 = arith.constant dense<0.000000e+00> : vector<8xf32>
    %9 = vector.multi_reduction <add>, %8, %cst_4 [1] : vector<8x32xf32> to vector<8xf32>
    %10 = vector.shape_cast %9 : vector<8xf32> to vector<8x1xf32>
    %11 = math.sqrt %10 : vector<8x1xf32>
    %c0_5 = arith.constant 0 : index
    %c0_6 = arith.constant 0 : index
    %12 = vector.load %arg3[%c0_5, %c0_6] : memref<8x1xf32, #tpu.memory_space<vmem>>, vector<8x1xf32>
    %cst_7 = arith.constant 1.000000e+00 : f32
    %13 = vector.broadcast %cst_7 : f32 to vector<8x1xf32>
    %14 = arith.subf %13, %11 : vector<8x1xf32>
    %cst_8 = arith.constant 0.000000e+00 : f32
    %15 = vector.broadcast %cst_8 : f32 to vector<8x1xf32>
    %16 = arith.maximumf %14, %15 : vector<8x1xf32>
    %cst_9 = arith.constant 1.000000e+00 : f32
    %17 = vector.broadcast %cst_9 : f32 to vector<8x1xf32>
    %18 = arith.subf %17, %12 : vector<8x1xf32>
    %19 = arith.mulf %18, %10 : vector<8x1xf32>
    %20 = arith.mulf %16, %16 : vector<8x1xf32>
    %21 = arith.mulf %12, %20 : vector<8x1xf32>
    %22 = arith.addf %19, %21 : vector<8x1xf32>
    %c8_i32 = arith.constant 8 : i32
    %23 = arith.muli %arg0, %c8_i32 : i32
    %24 = tpu.iota {dimensions = array<i32: 0>} : vector<8x1xi32>
    %25 = vector.broadcast %23 : i32 to vector<8x1xi32>
    %26 = arith.addi %25, %24 : vector<8x1xi32>
    %c8_i32_10 = arith.constant 8 : i32
    %27 = vector.broadcast %c8_i32_10 : i32 to vector<8x1xi32>
    %28 = arith.cmpi slt, %26, %27 : vector<8x1xi32>
    %cst_11 = arith.constant 0.000000e+00 : f32
    %29 = vector.broadcast %cst_11 : f32 to vector<8x1xf32>
    %30 = arith.select %28, %22, %29 : vector<8x1xi1>, vector<8x1xf32>
    %c0_12 = arith.constant 0 : index
    %c0_13 = arith.constant 0 : index
    %31 = vector.load %arg5[%c0_12, %c0_13] : memref<1x1xf32, #tpu.memory_space<vmem>>, vector<1x1xf32>
    %32 = vector.shape_cast %30 : vector<8x1xf32> to vector<1x8x1xf32>
    %cst_14 = arith.constant dense<0.000000e+00> : vector<1xf32>
    %33 = vector.multi_reduction <add>, %32, %cst_14 [1, 2] : vector<1x8x1xf32> to vector<1xf32>
    %34 = vector.shape_cast %33 : vector<1xf32> to vector<1x1x1xf32>
    %35 = vector.extract %34[0, 0, 0] : f32 from vector<1x1x1xf32>
    %36 = vector.broadcast %35 : f32 to vector<1x1xf32>
    %37 = arith.addf %31, %36 : vector<1x1xf32>
    %c0_15 = arith.constant 0 : index
    %c0_16 = arith.constant 0 : index
    %38 = vector.load %arg5[%c0_15, %c0_16] : memref<1x1xf32, #tpu.memory_space<vmem>>, vector<1x1xf32>
    tpu.vector_store %arg5[%c0_15, %c0_16], %37 {strides = array<i32>} : memref<1x1xf32, #tpu.memory_space<vmem>>, vector<1x1xf32>,
    %c0_i32_17 = arith.constant 0 : i32
    %39 = arith.cmpi eq, %arg0, %c0_i32_17 : i32
    %40 = arith.extui %39 : i1 to i32
    %c0_i32_18 = arith.constant 0 : i32
    %41 = arith.cmpi ne, %40, %c0_i32_18 : i32
    scf.if %41 {
      %c0_19 = arith.constant 0 : index
      %c0_20 = arith.constant 0 : index
      %42 = vector.load %arg5[%c0_19, %c0_20] : memref<1x1xf32, #tpu.memory_space<vmem>>, vector<1x1xf32>
      %cst_21 = arith.constant 1.250000e-01 : f32
      %43 = vector.broadcast %cst_21 : f32 to vector<1x1xf32>
      %44 = arith.mulf %42, %43 : vector<1x1xf32>
      %c0_22 = arith.constant 0 : index
      %c0_23 = arith.constant 0 : index
      %45 = vector.load %arg4[%c0_22, %c0_23] : memref<1x1xf32, #tpu.memory_space<vmem>>, vector<1x1xf32>
      tpu.vector_store %arg4[%c0_22, %c0_23], %44 {strides = array<i32>} : memref<1x1xf32, #tpu.memory_space<vmem>>, vector<1x1xf32>,
    } else {
    }
    return
  }
  func.func @transform_0(%arg0: i32) -> (i32, i32) {
    %c0_i32 = arith.constant 0 : i32
    %c0_i32_0 = arith.constant 0 : i32
    return %arg0, %c0_i32 : i32, i32
  }
  func.func @transform_1(%arg0: i32) -> (i32, i32) {
    %c0_i32 = arith.constant 0 : i32
    %c0_i32_0 = arith.constant 0 : i32
    return %arg0, %c0_i32 : i32, i32
  }
  func.func @transform_2(%arg0: i32) -> (i32, i32) {
    %c0_i32 = arith.constant 0 : i32
    %c0_i32_0 = arith.constant 0 : i32
    return %arg0, %c0_i32 : i32, i32
  }
  func.func @transform_3(%arg0: i32) -> (i32, i32) {
    %c0_i32 = arith.constant 0 : i32
    %c0_i32_0 = arith.constant 0 : i32
    %c0_i32_1 = arith.constant 0 : i32
    return %c0_i32, %c0_i32_0 : i32, i32
  }
}

</mosaic_0001>

<llo_original>
// kernel: tpu_custom_call.1
$region0: #{tpu_custom_call.1}
  #allocation0 [shape = 'u32[]', space=smem, size = 0x4, offset = 0x4, fixed_abs, tag = 'smem constant byte address 0x4 - core index']
  #allocation1 [shape = 'u32[72,128]{1,0:T(1,128)}', space=vmem, size = 0x9000, scoped, tag = 'internal scratch']
  #allocation2 [shape = 'f32[1,1]{1,0:T(1,128)}', space=vmem, size = 0x200, scoped, tag = 'scratch operand']
  %s0 = inlined_call_operand.vmem [shape: f32[8,32], index: 0, kind: input, shape index: {}]
  %s1 = inlined_call_operand.hbm [shape: f32[8,32], index: 1, kind: input, shape index: {}]
  %s2 = inlined_call_operand.vmem [shape: f32[8,1], index: 2, kind: input, shape index: {}]
  %s3 = inlined_call_operand.hbm [shape: f32[1,1], index: 3, kind: output, shape index: {}]
  %s4 = sld [smem:[#allocation0]]
  $region34: #{tpu_custom_call.1} parent=0
    _
  %s6 = ssub.s32 1, %s4
  %s7 = scalar_select 0, %s6, %s4
  $region1: #{tpu_custom_call.1} parent=0
    #allocation3 [shape = 'u8[4096]{0}', space=vmem, size = 0x1000, scoped, tag = 'input window, operand 1, single buffered']
    #allocation4 [shape = 's32[1]{0}', space=sflag, size = 0x4, scoped, tag = 'scoped memory for tpu_custom_call.1']
    #allocation5 [shape = 's32[1]{0}', space=sflag, size = 0x4, scoped, tag = 'scoped memory for tpu_custom_call.1']
    #allocation6 [shape = 'u8[512]{0}', space=vmem, size = 0x400, scoped, tag = 'output window, operand 0, single buffered']
    %8 = vsyncpa [#allocation4], 0
    %9 = vsyncpa [#allocation5], 0
    // Predicated region
    $region2: #{tpu_custom_call.1} parent=1 // pred_check
      _
    $region3: #{tpu_custom_call.1} parent=1 // pred_check_branch
      %11 = sbr.rel (0) target = $region5
    $region4: #{tpu_custom_call.1} parent=1 // pred_region
      _
    $region5: #{tpu_custom_call.1} parent=1 // pred_fallthru
      _
    // Predicated region
    $region6: #{tpu_custom_call.1} parent=1 // pred_check
      _
    $region7: #{tpu_custom_call.1} parent=1 // pred_check_branch
      %13 = sbr.rel (0) target = $region9
    $region8: #{tpu_custom_call.1} parent=1 // pred_region
      %15 = vsyncadd [#allocation4], 0
      %s17 = sshll.u32 %s1, 4
      %s18 = int_to_ptr.hbm [resolvable:$true] %s17
      %s19 = sshll.u32 [#allocation3], 4
      %s20 = int_to_ptr.vmem [resolvable:$true] %s19
      %22 = dma.hbm_to_vmem [thread:$0]  %s18, 128, %s20, [#allocation4]
    $region9: #{tpu_custom_call.1} parent=1 // pred_fallthru
      _
    // Predicated region
    $region10: #{tpu_custom_call.1} parent=1 // pred_check
      _
    $region11: #{tpu_custom_call.1} parent=1 // pred_check_branch
      %24 = sbr.rel (0) target = $region13
    $region12: #{tpu_custom_call.1} parent=1 // pred_region
      _
    $region13: #{tpu_custom_call.1} parent=1 // pred_fallthru
      _
    // Predicated region
    $region14: #{tpu_custom_call.1} parent=1 // pred_check
      _
    $region15: #{tpu_custom_call.1} parent=1 // pred_check_branch
      %26 = sbr.rel (0) target = $region17
    $region16: #{tpu_custom_call.1} parent=1 // pred_region
      %28 = dma.done [#allocation4], 128
    $region17: #{tpu_custom_call.1} parent=1 // pred_fallthru
      _
    %p29 = scmp.eq.s32.totalorder 0, 0
    // Predicated region
    $region18: #{tpu_custom_call.1} parent=1 // pred_check
      %p30 = pneg %p29
    $region19: #{tpu_custom_call.1} parent=1 // pred_check_branch
      %32 = sbr.rel (%p30) target = $region21
    $region20: #{tpu_custom_call.1} parent=1 // pred_region
      %vm33 = vcmask 0
      %34 = vst.msk [vmem:[#allocation2] sm:$0x1] %vm33, 0.0
    $region21: #{tpu_custom_call.1} parent=1 // pred_fallthru
      _
    %v35 = vld [vmem:[%s0] sm:$0xff]
    %v36 = vld [vmem:[#allocation3] sm:$0xff]
    %v37 = vsub.f32 %v35, %v36
    %v38 = vadd.f32 %v37, 1e-06
    %v39 = vmul.f32 %v38, %v38
    %vm40 = vcmask 261120
    %v41 = vsel %vm40, %v39, 0.0
    %42 = vadd.xlane.f32.xlu0 %v41
    %v43 = vpop.xlane.xlu0 %42
    %v44 = vrsqrt.pop %v43
    %v45 = vmul.f32 %v44, %v43
    %v46 = vmul.f32 %v45, %v44
    %v47 = vmul.f32 0.5, %v46
    %v48 = vsub.f32 1.5, %v47
    %v49 = vmul.f32 %v44, %v48
    %v50 = vmul.f32 %v43, %v49
    %vm51 = vcmp.eq.f32.partialorder %v43, inf
    %v52 = vsel %vm51, %v43, %v50
    %vm53 = vcmp.eq.f32.partialorder %v43, 0.0
    %v54 = vand.u32 %v43, 2147483648
    %v55 = vsel %vm53, %v54, %v52
    %v56 = vld [vmem:[%s2] sm:$0xff]
    %v57 = vsub.f32 1.0, %v55
    %v58 = vmax.f32 %v57, 0.0
    %v59 = vsub.f32 1.0, %v56
    %v60 = vmul.f32 %v59, %v43
    %v61 = vmul.f32 %v58, %v58
    %v62 = vmul.f32 %v56, %v61
    %v63 = vadd.f32 %v60, %v62
    %s64 = smul.u32 0, 8
    %v65 = vlaneseq
    %v66 = vshrl.u32 %v65, 7
    %v67 = vstv %s64
    %v68 = vadd.s32 %v67, %v66
    %vm69 = vcmp.lt.s32.totalorder %v68, 8
    %v70 = vsel %vm69, %v63, 0.0
    %v71 = vld [vmem:[#allocation2] sm:$0x1]
    %vm72 = vcmask 7168
    %v73 = vsel %vm72, %v70, 0.0
    %74 = vadd.xlane.f32.xlu0 %v73
    %v75 = vpop.xlane.xlu0 %74
    %v76 = vrot.slane %v75, 4
    %v77 = vadd.f32 %v75, %v76
    %v78 = vrot.slane %v77, 2
    %v79 = vadd.f32 %v77, %v78
    %v80 = vrot.slane %v79, 1
    %v81 = vadd.f32 %v79, %v80
    %s82 = vtos %v81
    %v83 = vstv %s82
    %v84 = vadd.f32 %v71, %v83
    %vm85 = vcmask 0
    %86 = vst.msk [vmem:[#allocation2] sm:$0x1] %vm85, %v84
    // Predicated region
    $region22: #{tpu_custom_call.1} parent=1 // pred_check
      %p87 = pneg %p29
    $region23: #{tpu_custom_call.1} parent=1 // pred_check_branch
      %89 = sbr.rel (%p87) target = $region25
    $region24: #{tpu_custom_call.1} parent=1 // pred_region
      %v90 = vld [vmem:[#allocation2] sm:$0x1]
      %v91 = vmul.f32 %v90, 0.125
      %92 = vst.msk [vmem:[#allocation6] sm:$0x1] %vm85, %v91
    $region25: #{tpu_custom_call.1} parent=1 // pred_fallthru
      _
    // Predicated region
    $region26: #{tpu_custom_call.1} parent=1 // pred_check
      _
    $region27: #{tpu_custom_call.1} parent=1 // pred_check_branch
      %94 = sbr.rel (0) target = $region29
    $region28: #{tpu_custom_call.1} parent=1 // pred_region
      %96 = vsyncadd [#allocation5], 0
      %s98 = sshll.u32 [#allocation6], 4
      %s99 = int_to_ptr.vmem [resolvable:$true] %s98
      %s100 = sshll.u32 %s3, 4
      %s101 = int_to_ptr.hbm [resolvable:$true] %s100
      %103 = dma.vmem_to_hbm [thread:$0]  %s99, 16, %s101, [#allocation5]
    $region29: #{tpu_custom_call.1} parent=1 // pred_fallthru
      _
    // Predicated region
    $region30: #{tpu_custom_call.1} parent=1 // pred_check
      _
    $region31: #{tpu_custom_call.1} parent=1 // pred_check_branch
      %105 = sbr.rel (0) target = $region33
    $region32: #{tpu_custom_call.1} parent=1 // pred_region
      %107 = dma.done [#allocation5], 16
    $region33: #{tpu_custom_call.1} parent=1 // pred_fallthru
      _
    %108 = vsyncpa [#allocation4], 1
    %109 = vsyncpa [#allocation5], 1

</llo_original>
